<compile_context>
chip_gen: v6e
topology: v6e:2x2x1
jax: 0.10.0
libtpu: 0.0.40
codegen_flags: <defaults>
</compile_context>

<pallas_src>
import functools

import jax
import jax.numpy as jnp
from jax.experimental import pallas as pl
from jax.experimental.pallas import tpu as pltpu


# ---------------------------------------------------------------------------
# Kernel
# ---------------------------------------------------------------------------
def _geu_kernel(x_ref, w1_ref, b1_ref, b2_ref, gamma_ref, beta_ref, w2_hbm,
                o_ref, *scratch, batch, n_k):
    if n_k > 1:
        h_acc, w2_buf, w2_sem = scratch
    else:
        w2_buf, w2_sem = scratch

    w2_copy = pltpu.make_async_copy(w2_hbm, w2_buf, w2_sem)

    def epilogue(h):
        # Wait for the W2 HBM->VMEM transfer (started at k==0, hidden behind
        # the entire K loop).
        w2_copy.wait()

        # cg.fc: h @ W2 + b2 (bf16 MXU operands, f32 accumulation).
        h1 = jnp.dot(h.astype(w2_buf.dtype), w2_buf[...],
                     preferred_element_type=jnp.float32) + b2_ref[...]

        # BatchNorm1d, training-mode batch statistics (biased, centered variance
        # for parity with torch).  Padded batch rows are masked out.
        b_pad = h1.shape[0]
        if b_pad == batch:
            mean = jnp.mean(h1, axis=0, keepdims=True)
            cen = h1 - mean
            var = jnp.mean(cen * cen, axis=0, keepdims=True)
        else:
            rows = jax.lax.broadcasted_iota(jnp.int32, (b_pad, 1), 0)
            msk = (rows < batch).astype(jnp.float32)
            inv_n = 1.0 / float(batch)
            mean = jnp.sum(h1 * msk, axis=0, keepdims=True) * inv_n
            cen = (h1 - mean) * msk
            var = jnp.sum(cen * cen, axis=0, keepdims=True) * inv_n
        h1n = (h1 - mean) * jax.lax.rsqrt(var + 1e-5)
        h1n = h1n * gamma_ref[...] + beta_ref[...]

        # GLU(cat((h, h1n), dim=1), dim=1) == h * sigmoid(h1n)
        g = h * jax.nn.sigmoid(h1n)

        # F.normalize(g, p=2, dim=-1) == g / max(||g||_2, 1e-12)
        #   == g * rsqrt(max(sum(g^2), 1e-24))   (EUP rsqrt + VPU multiply)
        sumsq = jnp.sum(g * g, axis=-1, keepdims=True)
        g = g * jax.lax.rsqrt(jnp.maximum(sumsq, 1e-24))

        o_ref[...] = g.astype(o_ref.dtype)

    if n_k == 1:
        # Fast path: no accumulator round-trip; W2 DMA overlaps the first matmul.
        w2_copy.start()
        h = jnp.dot(x_ref[...], w1_ref[...],
                    preferred_element_type=jnp.float32) + b1_ref[...]
        epilogue(h)
    else:
        k = pl.program_id(0)

        @pl.when(k == 0)
        def _():
            # Kick off W2 while the whole K loop runs.
            w2_copy.start()
            # Fold b1 into the accumulator init (no separate full-tile add).
            h_acc[...] = jnp.broadcast_to(b1_ref[...], h_acc.shape)

        # fc: x @ W1, K-tiled. bf16 operands on the MXU, f32 accumulation.
        h_acc[...] += jnp.dot(x_ref[...], w1_ref[...],
                              preferred_element_type=jnp.float32)

        @pl.when(k == n_k - 1)
        def _():
            epilogue(h_acc[...])


# ---------------------------------------------------------------------------
# Host-side helpers
# ---------------------------------------------------------------------------
def _round_up(n, m):
    return (n + m - 1) // m * m


def _pad2d(a, rows, cols, value=0.0):
    return jnp.pad(a, ((0, rows - a.shape[0]), (0, cols - a.shape[1])),
                   constant_values=value)


def _vmem_capacity_bytes():
    try:
        return int(pltpu.get_tpu_info().vmem_capacity_bytes)
    except Exception:
        return 64 * 1024 * 1024  # conservative (v7x) fallback


def _vmem_estimate(b_p, d_out_p, tk, out_itemsize, multi_k):
    est = 2 * b_p * tk * 2                    # x blocks (bf16, double-buffered)
    est += 2 * tk * d_out_p * 2               # W1 blocks (bf16, double-buffered)
    est += 2 * 4 * d_out_p * 4                # b1/b2/gamma/beta (f32, dbl-buf)
    est += 2 * b_p * d_out_p * out_itemsize   # output block
    est += d_out_p * d_out_p * 2              # W2 VMEM scratch (single-buffered)
    if multi_k:
        est += b_p * d_out_p * 4              # f32 accumulator
    est += 4 * b_p * d_out_p * 4              # epilogue temporaries (h1/h1n/g/casts)
    return est


def prepare_geu_params(w1, b1, w2, b2, gamma, beta):
    """One-time (outside the hot path): pad feature dims to multiples of 128 and
    cast matmul weights to bf16.  Zero padding keeps padded output columns
    exactly zero, so BN stats and row L2 norms are unaffected."""
    d_in, d_out = w1.shape
    d_in_p = _round_up(d_in, 128)
    d_out_p = _round_up(d_out, 128)
    return {
        "d_in": d_in,
        "d_out": d_out,
        "w1": _pad2d(w1, d_in_p, d_out_p).astype(jnp.bfloat16),
        "w2": _pad2d(w2, d_out_p, d_out_p).astype(jnp.bfloat16),
        "b1": _pad2d(b1.reshape(1, -1), 1, d_out_p).astype(jnp.float32),
        "b2": _pad2d(b2.reshape(1, -1), 1, d_out_p).astype(jnp.float32),
        "gamma": _pad2d(gamma.reshape(1, -1), 1, d_out_p, value=1.0).astype(jnp.float32),
        "beta": _pad2d(beta.reshape(1, -1), 1, d_out_p).astype(jnp.float32),
    }


def gated_embedding_unit(x, params, *, max_block_k=512):
    """x: [B, D_in] (f32); params: output of prepare_geu_params."""
    B, D_in = x.shape
    assert D_in == params["d_in"], "x feature dim does not match prepared params"
    D_out = params["d_out"]
    d_in_p, d_out_p = params["w1"].shape

    # Batch padded to the native bf16 sublane tile (16).
    b_p = _round_up(B, 16)
    out_itemsize = jnp.dtype(x.dtype).itemsize

    # Generation-aware VMEM budget; pick tk as the largest 128-multiple divisor
    # of d_in_p (zero K-padding waste) that fits the budget.
    cap = _vmem_capacity_bytes()
    budget = int(cap * 0.75)
    tk = 128
    cand = (min(max_block_k, d_in_p) // 128) * 128
    while cand > 128:
        if (d_in_p % cand == 0 and
                _vmem_estimate(b_p, d_out_p, cand, out_itemsize, d_in_p > cand) <= budget):
            tk = cand
            break
        cand -= 128
    n_k = d_in_p // tk

    vmem_limit = max(_vmem_estimate(b_p, d_out_p, tk, out_itemsize, n_k > 1) + (4 << 20),
                     32 << 20)
    vmem_limit = min(vmem_limit, int(cap * 0.9))

    # Per-call activation padding (bf16 MXU operand, lane-dense layout).
    x_p = _pad2d(x.astype(jnp.bfloat16), b_p, d_in_p)

    kernel = functools.partial(_geu_kernel, batch=B, n_k=n_k)

    scratch = []
    if n_k > 1:
        scratch.append(pltpu.VMEM((b_p, d_out_p), jnp.float32))     # h accumulator
    scratch.append(pltpu.VMEM((d_out_p, d_out_p), jnp.bfloat16))    # W2 (single-buffered)
    scratch.append(pltpu.SemaphoreType.DMA(()))                     # W2 DMA semaphore

    out = pl.pallas_call(
        kernel,
        out_shape=jax.ShapeDtypeStruct((b_p, d_out_p), x.dtype),
        grid_spec=pltpu.PrefetchScalarGridSpec(
            num_scalar_prefetch=0,
            grid=(n_k,),
            in_specs=[
                pl.BlockSpec((b_p, tk), lambda k: (0, k)),        # x: K-tiled
                pl.BlockSpec((tk, d_out_p), lambda k: (k, 0)),    # W1: K-tiled
                pl.BlockSpec((1, d_out_p), lambda k: (0, 0)),     # b1: resident
                pl.BlockSpec((1, d_out_p), lambda k: (0, 0)),     # b2: resident
                pl.BlockSpec((1, d_out_p), lambda k: (0, 0)),     # gamma: resident
                pl.BlockSpec((1, d_out_p), lambda k: (0, 0)),     # beta: resident
                pl.BlockSpec(memory_space=pl.ANY),                # W2: raw HBM ref (manual DMA)
            ],
            out_specs=pl.BlockSpec((b_p, d_out_p), lambda k: (0, 0)),
            scratch_shapes=scratch,
        ),
        compiler_params=pltpu.CompilerParams(
            dimension_semantics=("arbitrary",),      # K is a reduction axis
            vmem_limit_bytes=int(vmem_limit),
        ),
    )(x_p, params["w1"], params["b1"], params["b2"],
      params["gamma"], params["beta"], params["w2"])

    return out[:B, :D_out]


# ---------------------------------------------------------------------------
# Reference & test
# ---------------------------------------------------------------------------
def _reference(x, w1, b1, w2, b2, gamma, beta):
    # Pure-JAX reference with the torch semantics; mirrors the kernel's bf16
    # operand quantization so the comparison is like-for-like.
    f32 = jnp.float32
    xq = x.astype(jnp.bfloat16).astype(f32)
    w1q = w1.astype(jnp.bfloat16).astype(f32)
    w2q = w2.astype(jnp.bfloat16).astype(f32)
    h = xq @ w1q + b1
    h1 = h.astype(jnp.bfloat16).astype(f32) @ w2q + b2
    mean = jnp.mean(h1, axis=0, keepdims=True)
    var = jnp.mean((h1 - mean) ** 2, axis=0, keepdims=True)
    h1n = (h1 - mean) / jnp.sqrt(var + 1e-5) * gamma + beta
    g = h * jax.nn.sigmoid(h1n)
    norm = jnp.sqrt(jnp.sum(g * g, axis=-1, keepdims=True))
    return g / jnp.maximum(norm, 1e-12)


if __name__ == "__main__":
    def run_case(key, B, D_in, D_out, atol=2e-3):
        kx, k1, k2, k3, k4, k5, k6 = jax.random.split(key, 7)
        x = jax.random.normal(kx, (B, D_in), dtype=jnp.float32)

        lim1 = 1.0 / float(D_in) ** 0.5
        lim2 = 1.0 / float(D_out) ** 0.5
        w1 = jax.random.uniform(k1, (D_in, D_out), jnp.float32, -lim1, lim1)
        b1 = jax.random.uniform(k2, (1, D_out), jnp.float32, -lim1, lim1)
        w2 = jax.random.uniform(k3, (D_out, D_out), jnp.float32, -lim2, lim2)
        b2 = jax.random.uniform(k4, (1, D_out), jnp.float32, -lim2, lim2)
        gamma = 1.0 + 0.1 * jax.random.normal(k5, (1, D_out), jnp.float32)
        beta = 0.1 * jax.random.normal(k6, (1, D_out), jnp.float32)

        params = prepare_geu_params(w1, b1, w2, b2, gamma, beta)  # one-time prep
        out = gated_embedding_unit(x, params)
        out = jax.block_until_ready(out)

        ref = _reference(x, w1, b1, w2, b2, gamma, beta)
        assert out.shape == (B, D_out)
        max_err = float(jnp.max(jnp.abs(out - ref)))
        assert jnp.allclose(out, ref, atol=atol, rtol=atol), \
            f"mismatch vs reference (B={B}, D_in={D_in}, D_out={D_out}): max abs err {max_err}"

    key = jax.random.PRNGKey(0)
    k_a, k_b = jax.random.split(key)
    # n_k == 1 fast path, non-128 feature dims, padded-batch BN masking.
    run_case(k_a, B=8, D_in=48, D_out=80)
    # K-tiled accumulator path (d_in_p=640 -> tk=128, n_k=5), full-batch BN.
    run_case(k_b, B=16, D_in=640, D_out=96)

    print("KERNEL_OK")
</pallas_src>

<mosaic_0001>
module attributes {stable_mosaic.version = 11 : i64} {
  func.func @_geu_kernel(%arg0: i32, %arg1: memref<16x128xbf16, #tpu.memory_space<vmem>>, %arg2: memref<128x128xbf16, #tpu.memory_space<vmem>>, %arg3: memref<1x128xf32, #tpu.memory_space<vmem>>, %arg4: memref<1x128xf32, #tpu.memory_space<vmem>>, %arg5: memref<1x128xf32, #tpu.memory_space<vmem>>, %arg6: memref<1x128xf32, #tpu.memory_space<vmem>>, %arg7: memref<128x128xbf16, #tpu.memory_space<any>>, %arg8: memref<16x128xf32, #tpu.memory_space<vmem>>, %arg9: memref<128x128xbf16, #tpu.memory_space<vmem>>, %arg10: memref<!tpu.dma_semaphore, #tpu.memory_space<semaphore_mem>>) attributes {dimension_semantics = [#tpu.dimension_semantics<arbitrary>], iteration_bounds = array<i64: 1>, scalar_prefetch = 0 : i64, scratch_operands = 2 : i64, tpu.core_type = #tpu.core_type<tc>, window_params = [{transform_indices = @transform_0, window_bounds = array<i64: 16, 128>}, {transform_indices = @transform_1, window_bounds = array<i64: 128, 128>}, {pipeline_mode = #tpu.pipeline_mode<synchronous>, transform_indices = @transform_2, window_bounds = array<i64: 1, 128>}, {pipeline_mode = #tpu.pipeline_mode<synchronous>, transform_indices = @transform_3, window_bounds = array<i64: 1, 128>}, {pipeline_mode = #tpu.pipeline_mode<synchronous>, transform_indices = @transform_4, window_bounds = array<i64: 1, 128>}, {pipeline_mode = #tpu.pipeline_mode<synchronous>, transform_indices = @transform_5, window_bounds = array<i64: 1, 128>}, {}, {pipeline_mode = #tpu.pipeline_mode<synchronous>, transform_indices = @transform_7, window_bounds = array<i64: 16, 128>}]} {
    tpu.enqueue_dma source(%arg7 : memref<128x128xbf16, #tpu.memory_space<any>>) target(%arg9 : memref<128x128xbf16, #tpu.memory_space<vmem>>) target_semaphore(%arg10 : memref<!tpu.dma_semaphore, #tpu.memory_space<semaphore_mem>>)
    %c0 = arith.constant 0 : index
    %c0_0 = arith.constant 0 : index
    %0 = vector.load %arg1[%c0, %c0_0] : memref<16x128xbf16, #tpu.memory_space<vmem>>, vector<16x128xbf16>
    %c0_1 = arith.constant 0 : index
    %c0_2 = arith.constant 0 : index
    %1 = vector.load %arg2[%c0_1, %c0_2] : memref<128x128xbf16, #tpu.memory_space<vmem>>, vector<128x128xbf16>
    %cst = arith.constant dense<0.000000e+00> : vector<16x128xf32>
    %2 = tpu.matmul %0, %1, %cst {dimension_numbers = #tpu.dot_dimension_numbers<[1], [0], [0], [1], [0, 0, 1, 1], [], []>} : vector<16x128xbf16>, vector<128x128xbf16>, vector<16x128xf32> -> vector<16x128xf32>
    %c0_3 = arith.constant 0 : index
    %c0_4 = arith.constant 0 : index
    %3 = vector.load %arg3[%c0_3, %c0_4] : memref<1x128xf32, #tpu.memory_space<vmem>>, vector<1x128xf32>
    %4 = vector.broadcast %3 : vector<1x128xf32> to vector<16x128xf32>
    %5 = arith.addf %2, %4 : vector<16x128xf32>
    tpu.wait_dma2 semaphore(%arg10 : memref<!tpu.dma_semaphore, #tpu.memory_space<semaphore_mem>>) src(%arg7 : memref<128x128xbf16, #tpu.memory_space<any>>) dst(%arg9 : memref<128x128xbf16, #tpu.memory_space<vmem>>)
    %6 = arith.truncf %5 : vector<16x128xf32> to vector<16x128xbf16>
    %c0_5 = arith.constant 0 : index
    %c0_6 = arith.constant 0 : index
    %7 = vector.load %arg9[%c0_5, %c0_6] : memref<128x128xbf16, #tpu.memory_space<vmem>>, vector<128x128xbf16>
    %cst_7 = arith.constant dense<0.000000e+00> : vector<16x128xf32>
    %8 = tpu.matmul %6, %7, %cst_7 {dimension_numbers = #tpu.dot_dimension_numbers<[1], [0], [0], [1], [0, 0, 1, 1], [], []>} : vector<16x128xbf16>, vector<128x128xbf16>, vector<16x128xf32> -> vector<16x128xf32>
    %c0_8 = arith.constant 0 : index
    %c0_9 = arith.constant 0 : index
    %9 = vector.load %arg4[%c0_8, %c0_9] : memref<1x128xf32, #tpu.memory_space<vmem>>, vector<1x128xf32>
    %10 = vector.broadcast %9 : vector<1x128xf32> to vector<16x128xf32>
    %11 = arith.addf %8, %10 : vector<16x128xf32>
    %12 = tpu.iota {dimensions = array<i32: 0>} : vector<16x1xi32>
    %c8_i32 = arith.constant 8 : i32
    %13 = vector.broadcast %c8_i32 : i32 to vector<16x1xi32>
    %14 = arith.cmpi slt, %12, %13 : vector<16x1xi32>
    %15 = arith.extui %14 : vector<16x1xi1> to vector<16x1xi32>
    %16 = arith.sitofp %15 : vector<16x1xi32> to vector<16x1xf32>
    %17 = vector.broadcast %16 : vector<16x1xf32> to vector<16x128xf32>
    %18 = arith.mulf %11, %17 : vector<16x128xf32>
    %cst_10 = arith.constant dense<0.000000e+00> : vector<128xf32>
    %19 = vector.multi_reduction <add>, %18, %cst_10 [0] : vector<16x128xf32> to vector<128xf32>
    %20 = vector.shape_cast %19 : vector<128xf32> to vector<1x128xf32>
    %cst_11 = arith.constant 1.250000e-01 : f32
    %21 = vector.broadcast %cst_11 : f32 to vector<1x128xf32>
    %22 = arith.mulf %20, %21 : vector<1x128xf32>
    %23 = vector.broadcast %22 : vector<1x128xf32> to vector<16x128xf32>
    %24 = arith.subf %11, %23 : vector<16x128xf32>
    %25 = vector.broadcast %16 : vector<16x1xf32> to vector<16x128xf32>
    %26 = arith.mulf %24, %25 : vector<16x128xf32>
    %27 = arith.mulf %26, %26 : vector<16x128xf32>
    %cst_12 = arith.constant dense<0.000000e+00> : vector<128xf32>
    %28 = vector.multi_reduction <add>, %27, %cst_12 [0] : vector<16x128xf32> to vector<128xf32>
    %29 = vector.shape_cast %28 : vector<128xf32> to vector<1x128xf32>
    %cst_13 = arith.constant 1.250000e-01 : f32
    %30 = vector.broadcast %cst_13 : f32 to vector<1x128xf32>
    %31 = arith.mulf %29, %30 : vector<1x128xf32>
    %32 = vector.broadcast %22 : vector<1x128xf32> to vector<16x128xf32>
    %33 = arith.subf %11, %32 : vector<16x128xf32>
    %cst_14 = arith.constant 9.99999974E-6 : f32
    %34 = vector.broadcast %cst_14 : f32 to vector<1x128xf32>
    %35 = arith.addf %31, %34 : vector<1x128xf32>
    %36 = math.rsqrt %35 : vector<1x128xf32>
    %37 = vector.broadcast %36 : vector<1x128xf32> to vector<16x128xf32>
    %38 = arith.mulf %33, %37 : vector<16x128xf32>
    %c0_15 = arith.constant 0 : index
    %c0_16 = arith.constant 0 : index
    %39 = vector.load %arg5[%c0_15, %c0_16] : memref<1x128xf32, #tpu.memory_space<vmem>>, vector<1x128xf32>
    %40 = vector.broadcast %39 : vector<1x128xf32> to vector<16x128xf32>
    %41 = arith.mulf %38, %40 : vector<16x128xf32>
    %c0_17 = arith.constant 0 : index
    %c0_18 = arith.constant 0 : index
    %42 = vector.load %arg6[%c0_17, %c0_18] : memref<1x128xf32, #tpu.memory_space<vmem>>, vector<1x128xf32>
    %43 = vector.broadcast %42 : vector<1x128xf32> to vector<16x128xf32>
    %44 = arith.addf %41, %43 : vector<16x128xf32>
    %45 = arith.negf %44 : vector<16x128xf32>
    %46 = math.exp %45 : vector<16x128xf32>
    %cst_19 = arith.constant 1.000000e+00 : f32
    %47 = vector.broadcast %cst_19 : f32 to vector<16x128xf32>
    %48 = arith.addf %47, %46 : vector<16x128xf32>
    %49 = arith.divf %47, %48 : vector<16x128xf32>
    %50 = arith.mulf %5, %49 : vector<16x128xf32>
    %51 = arith.mulf %50, %50 : vector<16x128xf32>
    %cst_20 = arith.constant dense<0.000000e+00> : vector<16xf32>
    %52 = vector.multi_reduction <add>, %51, %cst_20 [1] : vector<16x128xf32> to vector<16xf32>
    %53 = vector.shape_cast %52 : vector<16xf32> to vector<16x1xf32>
    %cst_21 = arith.constant 1.000000e-24 : f32
    %54 = vector.broadcast %cst_21 : f32 to vector<16x1xf32>
    %55 = arith.maximumf %53, %54 : vector<16x1xf32>
    %56 = math.rsqrt %55 : vector<16x1xf32>
    %57 = vector.broadcast %56 : vector<16x1xf32> to vector<16x128xf32>
    %58 = arith.mulf %50, %57 : vector<16x128xf32>
    %c0_22 = arith.constant 0 : index
    %c0_23 = arith.constant 0 : index
    %59 = vector.load %arg8[%c0_22, %c0_23] : memref<16x128xf32, #tpu.memory_space<vmem>>, vector<16x128xf32>
    tpu.vector_store %arg8[%c0_22, %c0_23], %58 {strides = array<i32>} : memref<16x128xf32, #tpu.memory_space<vmem>>, vector<16x128xf32>,
    return
  }
  func.func @transform_0(%arg0: i32) -> (i32, i32) {
    %c0_i32 = arith.constant 0 : i32
    %c0_i32_0 = arith.constant 0 : i32
    return %c0_i32, %arg0 : i32, i32
  }
  func.func @transform_1(%arg0: i32) -> (i32, i32) {
    %c0_i32 = arith.constant 0 : i32
    %c0_i32_0 = arith.constant 0 : i32
    return %arg0, %c0_i32 : i32, i32
  }
  func.func @transform_2(%arg0: i32) -> (i32, i32) {
    %c0_i32 = arith.constant 0 : i32
    %c0_i32_0 = arith.constant 0 : i32
    %c0_i32_1 = arith.constant 0 : i32
    return %c0_i32, %c0_i32_0 : i32, i32
  }
  func.func @transform_3(%arg0: i32) -> (i32, i32) {
    %c0_i32 = arith.constant 0 : i32
    %c0_i32_0 = arith.constant 0 : i32
    %c0_i32_1 = arith.constant 0 : i32
    return %c0_i32, %c0_i32_0 : i32, i32
  }
  func.func @transform_4(%arg0: i32) -> (i32, i32) {
    %c0_i32 = arith.constant 0 : i32
    %c0_i32_0 = arith.constant 0 : i32
    %c0_i32_1 = arith.constant 0 : i32
    return %c0_i32, %c0_i32_0 : i32, i32
  }
  func.func @transform_5(%arg0: i32) -> (i32, i32) {
    %c0_i32 = arith.constant 0 : i32
    %c0_i32_0 = arith.constant 0 : i32
    %c0_i32_1 = arith.constant 0 : i32
    return %c0_i32, %c0_i32_0 : i32, i32
  }
  func.func @transform_7(%arg0: i32) -> (i32, i32) {
    %c0_i32 = arith.constant 0 : i32
    %c0_i32_0 = arith.constant 0 : i32
    %c0_i32_1 = arith.constant 0 : i32
    return %c0_i32, %c0_i32_0 : i32, i32
  }
}

</mosaic_0001>

<llo_original>
// kernel: tpu_custom_call.1
$region0: #{tpu_custom_call.1}
  #allocation0 [shape = 'u32[]', space=smem, size = 0x4, offset = 0x4, fixed_abs, tag = 'smem constant byte address 0x4 - core index']
  #allocation1 [shape = 'u32[144,128]{1,0:T(1,128)}', space=vmem, size = 0x12000, scoped, tag = 'internal scratch']
  #allocation2 [shape = 'bf16[128,128]{1,0:T(8,128)(2,1)}', space=vmem, size = 0x8000, scoped, tag = 'scratch operand']
  #allocation3 [shape = 's32[1]{0}', space=sflag, size = 0x4, scoped, tag = 'scratch operand']
  #allocation10 [shape = 's32[]', space=sflag, size = 0x4, offset = 0, fixed_abs, tag = 'sflag constant byte address 0x0 - dummy sync flag']
  #allocation11 [shape = 's32[]', space=sflag, size = 0x4, offset = 0, fixed_abs, tag = 'sflag constant byte address 0x0 - dummy sync flag']
  #allocation12 [shape = 'u32[]', space=smem, size = 0x4, offset = 0x44, fixed_abs, tag = 'smem constant byte address 0x44 - assertion arg 0']
  #allocation13 [shape = 'u32[]', space=smem, size = 0x4, offset = 0x48, fixed_abs, tag = 'smem constant byte address 0x48 - assertion arg 1']
  %s0 = inlined_call_operand.hbm [shape: bf16[16,128], index: 0, kind: input, shape index: {}]
  %s1 = inlined_call_operand.hbm [shape: bf16[128,128], index: 1, kind: input, shape index: {}]
  %s2 = inlined_call_operand.vmem [shape: f32[1,128], index: 2, kind: input, shape index: {}]
  %s3 = inlined_call_operand.vmem [shape: f32[1,128], index: 3, kind: input, shape index: {}]
  %s4 = inlined_call_operand.vmem [shape: f32[1,128], index: 4, kind: input, shape index: {}]
  %s5 = inlined_call_operand.vmem [shape: f32[1,128], index: 5, kind: input, shape index: {}]
  %s6 = inlined_call_operand.hbm [shape: bf16[128,128], index: 6, kind: input, shape index: {}]
  %s7 = inlined_call_operand.hbm [shape: f32[16,128], index: 7, kind: output, shape index: {}]
  %s8 = sld [smem:[#allocation0]]
  $region46: #{tpu_custom_call.1} parent=0
    _
  %s10 = ssub.s32 1, %s8
  %s11 = scalar_select 0, %s10, %s8
  $region1: #{tpu_custom_call.1} parent=0
    #allocation4 [shape = 'u8[4096]{0}', space=vmem, size = 0x1000, scoped, tag = 'input window, operand 0, single buffered']
    #allocation5 [shape = 's32[1]{0}', space=sflag, size = 0x4, scoped, tag = 'scoped memory for tpu_custom_call.1']
    #allocation6 [shape = 's32[1]{0}', space=sflag, size = 0x4, scoped, tag = 'scoped memory for tpu_custom_call.1']
    #allocation7 [shape = 'u8[32768]{0}', space=vmem, size = 0x8000, scoped, tag = 'input window, operand 1, single buffered']
    #allocation8 [shape = 's32[1]{0}', space=sflag, size = 0x4, scoped, tag = 'scoped memory for tpu_custom_call.1']
    #allocation9 [shape = 'u8[8192]{0}', space=vmem, size = 0x2000, scoped, tag = 'output window, operand 0, single buffered']
    %12 = vsyncpa [#allocation5], 0
    %13 = vsyncpa [#allocation8], 0
    %14 = vsyncpa [#allocation6], 0
    // Predicated region
    $region2: #{tpu_custom_call.1} parent=1 // pred_check
      _
    $region3: #{tpu_custom_call.1} parent=1 // pred_check_branch
      %16 = sbr.rel (0) target = $region5
    $region4: #{tpu_custom_call.1} parent=1 // pred_region
      %s18 = ssub.s32 128, 128
      %19 = vsyncadd [#allocation5], %s18
      %s20 = sshll.u32 [#allocation4], 4
      %s21 = int_to_ptr.vmem [resolvable:$true] %s20
      %26 = dma.hbm_to_vmem [thread:$0]  %s0, 128, %s21, [#allocation5], 64, 64, 4
    $region5: #{tpu_custom_call.1} parent=1 // pred_fallthru
      _
    // Predicated region
    $region6: #{tpu_custom_call.1} parent=1 // pred_check
      _
    $region7: #{tpu_custom_call.1} parent=1 // pred_check_branch
      %28 = sbr.rel (0) target = $region9
    $region8: #{tpu_custom_call.1} parent=1 // pred_region
      %s30 = ssub.s32 1024, 1024
      %31 = vsyncadd [#allocation8], %s30
      %s32 = sshll.u32 [#allocation7], 4
      %s33 = int_to_ptr.vmem [resolvable:$true] %s32
      %38 = dma.hbm_to_vmem [thread:$0]  %s1, 1024, %s33, [#allocation8], 64, 64, 4
    $region9: #{tpu_custom_call.1} parent=1 // pred_fallthru
      _
    // Predicated region
    $region10: #{tpu_custom_call.1} parent=1 // pred_check
      _
    $region11: #{tpu_custom_call.1} parent=1 // pred_check_branch
      %40 = sbr.rel (0) target = $region13
    $region12: #{tpu_custom_call.1} parent=1 // pred_region
      _
    $region13: #{tpu_custom_call.1} parent=1 // pred_fallthru
      _
    // Predicated region
    $region14: #{tpu_custom_call.1} parent=1 // pred_check
      _
    $region15: #{tpu_custom_call.1} parent=1 // pred_check_branch
      %42 = sbr.rel (0) target = $region17
    $region16: #{tpu_custom_call.1} parent=1 // pred_region
      _
    $region17: #{tpu_custom_call.1} parent=1 // pred_fallthru
      _
    // Predicated region
    $region18: #{tpu_custom_call.1} parent=1 // pred_check
      _
    $region19: #{tpu_custom_call.1} parent=1 // pred_check_branch
      %44 = sbr.rel (0) target = $region21
    $region20: #{tpu_custom_call.1} parent=1 // pred_region
      _
    $region21: #{tpu_custom_call.1} parent=1 // pred_fallthru
      _
    // Predicated region
    $region22: #{tpu_custom_call.1} parent=1 // pred_check
      _
    $region23: #{tpu_custom_call.1} parent=1 // pred_check_branch
      %46 = sbr.rel (0) target = $region25
    $region24: #{tpu_custom_call.1} parent=1 // pred_region
      _
    $region25: #{tpu_custom_call.1} parent=1 // pred_fallthru
      _
    // Predicated region
    $region26: #{tpu_custom_call.1} parent=1 // pred_check
      _
    $region27: #{tpu_custom_call.1} parent=1 // pred_check_branch
      %48 = sbr.rel (0) target = $region29
    $region28: #{tpu_custom_call.1} parent=1 // pred_region
      %49 = dma.done [#allocation5], 128
    $region29: #{tpu_custom_call.1} parent=1 // pred_fallthru
      _
    // Predicated region
    $region30: #{tpu_custom_call.1} parent=1 // pred_check
      _
    $region31: #{tpu_custom_call.1} parent=1 // pred_check_branch
      %51 = sbr.rel (0) target = $region33
    $region32: #{tpu_custom_call.1} parent=1 // pred_region
      %52 = dma.done [#allocation8], 1024
    $region33: #{tpu_custom_call.1} parent=1 // pred_fallthru
      _
    // Predicated region
    $region34: #{tpu_custom_call.1} parent=1 // pred_check
      _
    $region35: #{tpu_custom_call.1} parent=1 // pred_check_branch
      %55 = sbr.rel target = $region37
    $region36: #{tpu_custom_call.1} parent=1 // pred_region
      %56 = sst [smem:[#allocation12]] [#allocation11]
      %57 = sst [smem:[#allocation13]] [#allocation10]
    $region37: #{tpu_custom_call.1} parent=1 // pred_fallthru
      _
    %59 = shalt.err (0)
    %s61 = sshll.u32 [#allocation2], 4
    %s62 = int_to_ptr.vmem [resolvable:$true] %s61
    %64 = dma.hbm_to_vmem [thread:$0]  %s6, 1024, %s62, [#allocation3]
    %v65 = vld [vmem:[#allocation4] sm:$0xf]
    %v66 = vld [vmem:[#allocation4 + $0x4] sm:$0xf]
    %v67 = vld [vmem:[#allocation7] sm:$0xf]
    %v68 = vld [vmem:[#allocation7 + $0x4] sm:$0xf]
    %v69 = vld [vmem:[#allocation7 + $0x8] sm:$0xf]
    %v70 = vld [vmem:[#allocation7 + $0xc] sm:$0xf]
    %v71 = vld [vmem:[#allocation7 + $0x10] sm:$0xf]
    %v72 = vld [vmem:[#allocation7 + $0x14] sm:$0xf]
    %v73 = vld [vmem:[#allocation7 + $0x18] sm:$0xf]
    %v74 = vld [vmem:[#allocation7 + $0x1c] sm:$0xf]
    %v75 = vld [vmem:[#allocation7 + $0x20] sm:$0xf]
    %v76 = vld [vmem:[#allocation7 + $0x24] sm:$0xf]
    %v77 = vld [vmem:[#allocation7 + $0x28] sm:$0xf]
    %v78 = vld [vmem:[#allocation7 + $0x2c] sm:$0xf]
    %v79 = vld [vmem:[#allocation7 + $0x30] sm:$0xf]
    %v80 = vld [vmem:[#allocation7 + $0x34] sm:$0xf]
    %v81 = vld [vmem:[#allocation7 + $0x38] sm:$0xf]
    %v82 = vld [vmem:[#allocation7 + $0x3c] sm:$0xf]
    %v83 = vld [vmem:[%s2] sm:$0x1]
    %v85 = vlaneseq
    %v86 = vshrl.u32 %v85, 7
    %v87 = vsub.s32 0, %v86
    %v88 = vrot.slane %v83, %v87
    %v92 = vunpack.c.l.b16 %v65
    %v93 = vunpack.c.l.b16 %v66
    %v94 = vpack.c.b16 %v93, %v92
    %v112 = vunpack.c.l.b16 %v67
    %v113 = vunpack.c.l.b16 %v68
    %v114 = vunpack.c.l.b16 %v69
    %v115 = vunpack.c.l.b16 %v70
    %v116 = vunpack.c.l.b16 %v71
    %v117 = vunpack.c.l.b16 %v72
    %v118 = vunpack.c.l.b16 %v73
    %v119 = vunpack.c.l.b16 %v74
    %v120 = vunpack.c.l.b16 %v75
    %v121 = vunpack.c.l.b16 %v76
    %v122 = vunpack.c.l.b16 %v77
    %v123 = vunpack.c.l.b16 %v78
    %v124 = vunpack.c.l.b16 %v79
    %v125 = vunpack.c.l.b16 %v80
    %v126 = vunpack.c.l.b16 %v81
    %v127 = vunpack.c.l.b16 %v82
    %v128 = vpack.c.b16 %v113, %v112
    %v129 = vpack.c.b16 %v115, %v114
    %v130 = vpack.c.b16 %v117, %v116
    %v131 = vpack.c.b16 %v119, %v118
    %v132 = vpack.c.b16 %v121, %v120
    %v133 = vpack.c.b16 %v123, %v122
    %v134 = vpack.c.b16 %v125, %v124
    %v135 = vpack.c.b16 %v127, %v126
    %144 = vmatprep.subr.bf16.mxu0 0
    %145 = vmatpush1.bf16.msra.mxu0 %v135
    %146 = vmatprep.subr.bf16.mxu0 0
    %147 = vmatpush1.bf16.msra.mxu0 %v134
    %148 = vmatprep.subr.bf16.mxu0 0
    %149 = vmatpush1.bf16.msra.mxu0 %v133
    %150 = vmatprep.subr.bf16.mxu0 0
    %151 = vmatpush1.bf16.msra.mxu0 %v132
    %152 = vmatprep.subr.bf16.mxu0 0
    %153 = vmatpush1.bf16.msra.mxu0 %v131
    %154 = vmatprep.subr.bf16.mxu0 0
    %155 = vmatpush1.bf16.msra.mxu0 %v130
    %156 = vmatprep.subr.bf16.mxu0 0
    %157 = vmatpush1.bf16.msra.mxu0 %v129
    %158 = vmatprep.subr.bf16.mxu0 0
    %159 = vmatpush1.bf16.msra.mxu0 %v128
    %160 = vmatprep.subr.bf16.mxu0 0
    %161 = vmatpush2.bf16.msra.mxu0 0
    %162 = vmatprep.subr.bf16.mxu0 0
    %163 = vmatpush2.bf16.msra.mxu0 0
    %164 = vmatprep.subr.bf16.mxu0 0
    %165 = vmatpush2.bf16.msra.mxu0 0
    %166 = vmatprep.subr.bf16.mxu0 0
    %167 = vmatpush2.bf16.msra.mxu0 0
    %168 = vmatprep.subr.bf16.mxu0 0
    %169 = vmatpush2.bf16.msra.mxu0 0
    %170 = vmatprep.subr.bf16.mxu0 0
    %171 = vmatpush2.bf16.msra.mxu0 0
    %172 = vmatprep.subr.bf16.mxu0 0
    %173 = vmatpush2.bf16.msra.mxu0 0
    %174 = vmatprep.subr.bf16.mxu0 0
    %175 = vmatpush2.bf16.msra.mxu0 0
    %176 = vmatprep.mubr.bf16.mxu0 0
    %177 = vmatmul.mubr.bf16.gmra.mxu0 %v94
    %v178 = vpop.f32.mrf.mxu0
    %v179 = vadd.f32 %v88, %v178
    %v180 = vpop.f32.mrf.mxu0
    %v181 = vpop.f32.mrf.mxu0
    %v182 = vadd.f32 %v88, %v181
    %v183 = vpop.f32.mrf.mxu0
    %184 = vdwg.mxu0
    %s185 = smul.u32 4, 16
    %s186 = smul.u32 %s185, 1
    %s187 = sshll.u32 %s186, 4
    %188 = dma.done [#allocation3], %s187
    %v189 = vpack.c.bf16 %v182, %v179
    %v190 = vld [vmem:[#allocation2] sm:$0xf]
    %v191 = vld [vmem:[#allocation2 + $0x4] sm:$0xf]
    %v192 = vld [vmem:[#allocation2 + $0x8] sm:$0xf]
    %v193 = vld [vmem:[#allocation2 + $0xc] sm:$0xf]
    %v194 = vld [vmem:[#allocation2 + $0x10] sm:$0xf]
    %v195 = vld [vmem:[#allocation2 + $0x14] sm:$0xf]
    %v196 = vld [vmem:[#allocation2 + $0x18] sm:$0xf]
    %v197 = vld [vmem:[#allocation2 + $0x1c] sm:$0xf]
    %v198 = vld [vmem:[#allocation2 + $0x20] sm:$0xf]
    %v199 = vld [vmem:[#allocation2 + $0x24] sm:$0xf]
    %v200 = vld [vmem:[#allocation2 + $0x28] sm:$0xf]
    %v201 = vld [vmem:[#allocation2 + $0x2c] sm:$0xf]
    %v202 = vld [vmem:[#allocation2 + $0x30] sm:$0xf]
    %v203 = vld [vmem:[#allocation2 + $0x34] sm:$0xf]
    %v204 = vld [vmem:[#allocation2 + $0x38] sm:$0xf]
    %v205 = vld [vmem:[#allocation2 + $0x3c] sm:$0xf]
    %v206 = vld [vmem:[%s3] sm:$0x1]
    %v208 = vlaneseq
    %v209 = vshrl.u32 %v208, 7
    %v210 = vsub.s32 0, %v209
    %v211 = vrot.slane %v206, %v210
    %v229 = vunpack.c.l.b16 %v190
    %v230 = vunpack.c.l.b16 %v191
    %v231 = vunpack.c.l.b16 %v192
    %v232 = vunpack.c.l.b16 %v193
    %v233 = vunpack.c.l.b16 %v194
    %v234 = vunpack.c.l.b16 %v195
    %v235 = vunpack.c.l.b16 %v196
    %v236 = vunpack.c.l.b16 %v197
    %v237 = vunpack.c.l.b16 %v198
    %v238 = vunpack.c.l.b16 %v199
    %v239 = vunpack.c.l.b16 %v200
    %v240 = vunpack.c.l.b16 %v201
    %v241 = vunpack.c.l.b16 %v202
    %v242 = vunpack.c.l.b16 %v203
    %v243 = vunpack.c.l.b16 %v204
    %v244 = vunpack.c.l.b16 %v205
    %v245 = vpack.c.b16 %v230, %v229
    %v246 = vpack.c.b16 %v232, %v231
    %v247 = vpack.c.b16 %v234, %v233
    %v248 = vpack.c.b16 %v236, %v235
    %v249 = vpack.c.b16 %v238, %v237
    %v250 = vpack.c.b16 %v240, %v239
    %v251 = vpack.c.b16 %v242, %v241
    %v252 = vpack.c.b16 %v244, %v243
    %261 = vmatprep.subr.bf16.mxu0 0
    %262 = vmatpush1.bf16.msra.mxu0 %v252
    %263 = vmatprep.subr.bf16.mxu0 0
    %264 = vmatpush1.bf16.msra.mxu0 %v251
    %265 = vmatprep.subr.bf16.mxu0 0
    %266 = vmatpush1.bf16.msra.mxu0 %v250
    %267 = vmatprep.subr.bf16.mxu0 0
    %268 = vmatpush1.bf16.msra.mxu0 %v249
    %269 = vmatprep.subr.bf16.mxu0 0
    %270 = vmatpush1.bf16.msra.mxu0 %v248
    %271 = vmatprep.subr.bf16.mxu0 0
    %272 = vmatpush1.bf16.msra.mxu0 %v247
    %273 = vmatprep.subr.bf16.mxu0 0
    %274 = vmatpush1.bf16.msra.mxu0 %v246
    %275 = vmatprep.subr.bf16.mxu0 0
    %276 = vmatpush1.bf16.msra.mxu0 %v245
    %277 = vmatprep.subr.bf16.mxu0 0
    %278 = vmatpush2.bf16.msra.mxu0 0
    %279 = vmatprep.subr.bf16.mxu0 0
    %280 = vmatpush2.bf16.msra.mxu0 0
    %281 = vmatprep.subr.bf16.mxu0 0
    %282 = vmatpush2.bf16.msra.mxu0 0
    %283 = vmatprep.subr.bf16.mxu0 0
    %284 = vmatpush2.bf16.msra.mxu0 0
    %285 = vmatprep.subr.bf16.mxu0 0
    %286 = vmatpush2.bf16.msra.mxu0 0
    %287 = vmatprep.subr.bf16.mxu0 0
    %288 = vmatpush2.bf16.msra.mxu0 0
    %289 = vmatprep.subr.bf16.mxu0 0
    %290 = vmatpush2.bf16.msra.mxu0 0
    %291 = vmatprep.subr.bf16.mxu0 0
    %292 = vmatpush2.bf16.msra.mxu0 0
    %293 = vmatprep.mubr.bf16.mxu0 0
    %294 = vmatmul.mubr.bf16.gmra.mxu0 %v189
    %v295 = vpop.f32.mrf.mxu0
    %v296 = vadd.f32 %v211, %v295
    %v297 = vpop.f32.mrf.mxu0
    %v298 = vpop.f32.mrf.mxu0
    %v299 = vadd.f32 %v211, %v298
    %v300 = vpop.f32.mrf.mxu0
    %301 = vdwg.mxu0
    %v302 = vlaneseq
    %v303 = vshrl.u32 %v302, 7
    %v304 = vadd.s32 %v303, 8
    %vm305 = vcmp.lt.s32.totalorder %v303, 8
    %vm306 = vcmp.lt.s32.totalorder %v304, 8
    %v307 = vsel %vm305, 1, 0
    %v308 = vsel %vm306, 1, 0
    %v309 = vcvt.s32.f32 %v307
    %v310 = vcvt.s32.f32 %v308
    %v311 = vmul.f32 %v296, %v309
    %v312 = vmul.f32 %v299, %v310
    %v313 = vadd.f32 %v311, %v312
    %v314 = vrot.slane %v313, 4
    %v315 = vadd.f32 %v313, %v314
    %v316 = vrot.slane %v315, 2
    %v317 = vadd.f32 %v315, %v316
    %v318 = vrot.slane %v317, 1
    %v319 = vadd.f32 %v317, %v318
    %v320 = vmul.f32 %v319, 0.125
    %v321 = vsub.f32 %v296, %v320
    %v322 = vsub.f32 %v299, %v320
    %v323 = vmul.f32 %v321, %v309
    %v324 = vmul.f32 %v322, %v310
    %v325 = vmul.f32 %v323, %v323
    %v326 = vmul.f32 %v324, %v324
    %v327 = vadd.f32 %v325, %v326
    %v328 = vrot.slane %v327, 4
    %v329 = vadd.f32 %v327, %v328
    %v330 = vrot.slane %v329, 2
    %v331 = vadd.f32 %v329, %v330
    %v332 = vrot.slane %v331, 1
    %v333 = vadd.f32 %v331, %v332
    %v334 = vmul.f32 %v333, 0.125
    %v335 = vadd.f32 %v334, 1e-05
    %v336 = vrsqrt.pop %v335
    %v337 = vmul.f32 %v321, %v336
    %v338 = vmul.f32 %v322, %v336
    %v339 = vld [vmem:[%s4] sm:$0x1]
    %v341 = vlaneseq
    %v342 = vshrl.u32 %v341, 7
    %v343 = vsub.s32 0, %v342
    %v344 = vrot.slane %v339, %v343
    %v346 = vmul.f32 %v337, %v344
    %v347 = vmul.f32 %v338, %v344
    %v348 = vld [vmem:[%s5] sm:$0x1]
    %v350 = vlaneseq
    %v351 = vshrl.u32 %v350, 7
    %v352 = vsub.s32 0, %v351
    %v353 = vrot.slane %v348, %v352
    %v355 = vadd.f32 %v346, %v353
    %v356 = vadd.f32 %v347, %v353
    %v357 = vxor.u32 %v355, 2147483648
    %v358 = vxor.u32 %v356, 2147483648
    %v359 = vmul.f32 %v357, 1.442695
    %v360 = vpow.pop %v359
    %v361 = vmul.f32 %v358, 1.442695
    %v362 = vpow.pop %v361
    %v363 = vadd.f32 %v360, 1.0
    %v364 = vadd.f32 %v362, 1.0
    %v365 = vrcp.pop %v363
    %v366 = vmul.f32 1.0, %v365
    %v367 = vrcp.pop %v364
    %v368 = vmul.f32 1.0, %v367
    %v369 = vmul.f32 %v179, %v366
    %v370 = vmul.f32 %v182, %v368
    %v371 = vmul.f32 %v369, %v369
    %v372 = vmul.f32 %v370, %v370
    %373 = vadd.xlane.f32.xlu0 %v371
    %v374 = vpop.xlane.xlu0 %373
    %375 = vadd.xlane.f32.xlu0 %v372
    %v376 = vpop.xlane.xlu0 %375
    %v377 = vmax.f32 %v374, 1e-24
    %v378 = vmax.f32 %v376, 1e-24
    %v379 = vrsqrt.pop %v377
    %v380 = vrsqrt.pop %v378
    %v381 = vmul.f32 %v369, %v379
    %v382 = vmul.f32 %v370, %v380
    %383 = vst [vmem:[#allocation9] sm:$0xff] %v381
    %384 = vst [vmem:[#allocation9 + $0x8] sm:$0xff] %v382
    // Predicated region
    $region38: #{tpu_custom_call.1} parent=1 // pred_check
      _
    $region39: #{tpu_custom_call.1} parent=1 // pred_check_branch
      %386 = sbr.rel (0) target = $region41
    $region40: #{tpu_custom_call.1} parent=1 // pred_region
      %s388 = ssub.s32 256, 256
      %389 = vsyncadd [#allocation6], %s388
      %s390 = sshll.u32 [#allocation9], 4
      %s391 = int_to_ptr.vmem [resolvable:$true] %s390
      %396 = dma.vmem_to_hbm [thread:$0]  %s391, 256, %s7, [#allocation6], 128, 128, 8
    $region41: #{tpu_custom_call.1} parent=1 // pred_fallthru
      _
    // Predicated region
    $region42: #{tpu_custom_call.1} parent=1 // pred_check
      _
    $region43: #{tpu_custom_call.1} parent=1 // pred_check_branch
      %398 = sbr.rel (0) target = $region45
    $region44: #{tpu_custom_call.1} parent=1 // pred_region
      %399 = dma.done [#allocation6], 256
    $region45: #{tpu_custom_call.1} parent=1 // pred_fallthru
      _
    %400 = vsyncpa [#allocation5], 1
    %401 = vsyncpa [#allocation8], 1
    %402 = vsyncpa [#allocation6], 1
  %403 = vsyncmov [#allocation3]
  %s404 = vpop.sfrf %403
  %p405 = scmp.eq.s32.totalorder %s404, 0
  %p406 = pneg %p405
  %408 = shalt.err (%p406)

</llo_original>
